<compile_context>
chip_gen: v7x
topology: tpu7x:2x2x1
jax: 0.10.0
libtpu: 0.0.40
codegen_flags: <defaults>
</compile_context>

<pallas_src>
import functools
import math

import jax
import jax.numpy as jnp
from jax import lax
from jax.experimental import pallas as pl
from jax.experimental.pallas import tpu as pltpu


def _round_up(x, m):
    return (x + m - 1) // m * m


# ---------------------------------------------------------------------------
# Parameter init (PyTorch nn.GRUCell default: U(-1/sqrt(H), 1/sqrt(H)))
# ---------------------------------------------------------------------------
def init_stacking_gru_raw_params(key, input_size, hidden_size, num_layers):
    params = []
    bound = 1.0 / math.sqrt(hidden_size)
    for layer in range(num_layers):
        in_dim = input_size if layer == 0 else hidden_size
        key, k1, k2, k3, k4 = jax.random.split(key, 5)
        params.append({
            "w_ih": jax.random.uniform(k1, (3 * hidden_size, in_dim),
                                       jnp.float32, -bound, bound),
            "w_hh": jax.random.uniform(k2, (3 * hidden_size, hidden_size),
                                       jnp.float32, -bound, bound),
            "b_ih": jax.random.uniform(k3, (3 * hidden_size,),
                                       jnp.float32, -bound, bound),
            "b_hh": jax.random.uniform(k4, (3 * hidden_size,),
                                       jnp.float32, -bound, bound),
        })
    return params


# ---------------------------------------------------------------------------
# Weight packing
# ---------------------------------------------------------------------------
def pack_stacking_gru_params(raw_params, input_size, hidden_size,
                             matmul_dtype=jnp.bfloat16):
    """Pack per-layer PyTorch GRUCell params into stacked fused weights.

    Column layout with gate stride S: [r | z | i_n | h_n], G lanes total.
      * H < 128 (and it saves lanes): S = H (compact), G = round_up(4H, 128)
      * otherwise:                    S = round_up(H, 128), G = 4*S (aligned)
    Rows: W_x has Kx = round_up(max(input_size, H), 8) rows (rows >= H are zero
    for layers > 0), W_h has Kh = round_up(H, 8) rows.  Biases are pre-folded
    (b_ih + b_hh for r/z; b_in at offset 2S, b_hn at 3S).  Gate order matches
    PyTorch: [r, z, n].
    """
    H = hidden_size
    L = len(raw_params)
    Hp = _round_up(H, 128)
    S = H if (H < 128 and _round_up(4 * H, 128) < 4 * Hp) else Hp
    G = _round_up(3 * S + H, 128)
    Kx = _round_up(max(input_size, H), 8)
    Kh = _round_up(H, 8)

    wx = jnp.zeros((L, Kx, G), jnp.float32)
    wh = jnp.zeros((L, Kh, G), jnp.float32)
    b = jnp.zeros((L, 1, G), jnp.float32)
    for l, p in enumerate(raw_params):
        in_dim = input_size if l == 0 else H
        w_ih_t = p["w_ih"].T.astype(jnp.float32)   # (in_dim, 3H)  [r|z|n]
        w_hh_t = p["w_hh"].T.astype(jnp.float32)   # (H, 3H)       [r|z|n]
        b_ih = p["b_ih"].astype(jnp.float32)
        b_hh = p["b_hh"].astype(jnp.float32)

        for g in range(3):                                   # r, z, i_n
            wx = wx.at[l, :in_dim, g * S:g * S + H].set(
                w_ih_t[:, g * H:(g + 1) * H])
        for g in range(2):                                   # r, z (hidden)
            wh = wh.at[l, :H, g * S:g * S + H].set(
                w_hh_t[:, g * H:(g + 1) * H])
        wh = wh.at[l, :H, 3 * S:3 * S + H].set(w_hh_t[:, 2 * H:3 * H])  # h_n

        b = b.at[l, 0, 0 * S:0 * S + H].set(b_ih[0:H] + b_hh[0:H])
        b = b.at[l, 0, 1 * S:1 * S + H].set(b_ih[H:2 * H] + b_hh[H:2 * H])
        b = b.at[l, 0, 2 * S:2 * S + H].set(b_ih[2 * H:3 * H])
        b = b.at[l, 0, 3 * S:3 * S + H].set(b_hh[2 * H:3 * H])

    return {"wx": wx.astype(matmul_dtype), "wh": wh.astype(matmul_dtype),
            "b": b, "hidden_size": H, "input_size": input_size,
            "gate_stride": S}


# ---------------------------------------------------------------------------
# Kernels
# ---------------------------------------------------------------------------
def _gru_gate_math(gates, h_prev_h, H, S):
    """PyTorch GRUCell update from packed f32 gate pre-activations."""
    r = jax.nn.sigmoid(gates[:, 0 * S:0 * S + H])
    z = jax.nn.sigmoid(gates[:, 1 * S:1 * S + H])
    n = jnp.tanh(gates[:, 2 * S:2 * S + H] + r * gates[:, 3 * S:3 * S + H])
    return (1.0 - z) * n + z * h_prev_h


def _gru_fused_kernel(x_ref, h0_ref, wx_ref, wh_ref, b_ref, hn_ref,
                      *, H, S, num_layers):
    """All layers in one grid step; inter-layer activation carried in vregs.

    x_ref:  (B, Kx)     f32, zero-padded layer-0 input
    h0_ref: (L, B, Kh)  f32, zero-padded initial hidden states
    wx_ref: (L, Kx, G)  matmul-dtype input->gate weights  [r | z | i_n | h_n]
    wh_ref: (L, Kh, G)  matmul-dtype hidden->gate weights
    b_ref:  (L, 1, G)   f32, pre-folded biases
    hn_ref: (L, B, H)   new hidden state per layer (unpadded)
    """
    B, Kx = x_ref.shape
    mm_dtype = wx_ref.dtype

    def layer(l, x_cur):
        h_prev = h0_ref[l]                                           # (B, Kh)
        gates = (jnp.dot(x_cur.astype(mm_dtype), wx_ref[l],
                         preferred_element_type=jnp.float32)
                 + jnp.dot(h_prev.astype(mm_dtype), wh_ref[l],
                           preferred_element_type=jnp.float32)
                 + b_ref[l])
        h_new = _gru_gate_math(gates, h_prev[:, :H], H, S)           # (B, H)
        hn_ref[l] = h_new.astype(hn_ref.dtype)
        # Next layer's input (inference-mode dropout == identity).  Padded
        # lanes [H, Kx) only ever meet zero weight rows for layers > 0.
        if Kx > H:
            h_new = jnp.concatenate(
                [h_new, jnp.zeros((B, Kx - H), h_new.dtype)], axis=1)
        return h_new

    lax.fori_loop(0, num_layers, layer, x_ref[...], unroll=True)


def _gru_layer_grid_kernel(x_ref, h0_ref, wx_ref, wh_ref, b_ref, hn_ref,
                           carry_ref, *, H, S):
    """Fallback: one layer per grid step (grid=(L,), 'arbitrary').

    carry_ref: (B, Kx) matmul-dtype VMEM scratch holding the current layer's
    input; persists across grid steps.  Lanes [H, Kx) after layer 0 are stale
    but only multiply zero weight rows of wx for layers > 0.
    """
    l = pl.program_id(0)

    @pl.when(l == 0)
    def _():
        carry_ref[...] = x_ref[...].astype(carry_ref.dtype)

    h_prev = h0_ref[...]                                             # (B, Kh)
    gates = (jnp.dot(carry_ref[...], wx_ref[...],
                     preferred_element_type=jnp.float32)
             + jnp.dot(h_prev.astype(wh_ref.dtype), wh_ref[...],
                       preferred_element_type=jnp.float32)
             + b_ref[...])
    h_new = _gru_gate_math(gates, h_prev[:, :H], H, S)
    hn_ref[...] = h_new.astype(hn_ref.dtype)
    carry_ref[:, :H] = h_new.astype(carry_ref.dtype)


# ---------------------------------------------------------------------------
# Wrapper
# ---------------------------------------------------------------------------
def _vmem_capacity_bytes():
    try:
        return int(pltpu.get_tpu_info().vmem_capacity_bytes)
    except Exception:
        return 64 << 20            # conservative (v7x per-TensorCore)


def stacking_gru_cell_forward(x, h0, packed, *, out_dtype=jnp.float32):
    """
    x:  (batch, input_size)
    h0: (num_layers, batch, hidden_size)
    returns (output (batch, hidden), hn (num_layers, batch, hidden))
    """
    H = packed["hidden_size"]
    S = packed["gate_stride"]
    wx, wh, b = packed["wx"], packed["wh"], packed["b"]
    L, Kx, G = wx.shape
    Kh = wh.shape[1]
    B = x.shape[0]
    itemsize = jnp.dtype(wx.dtype).itemsize

    # Zero-pad layer-0 input and h0 to the packed row widths.
    x_p = jnp.zeros((B, Kx), jnp.float32).at[:, :x.shape[1]].set(
        x.astype(jnp.float32))
    h0_p = jnp.zeros((L, B, Kh), jnp.float32).at[:, :, :H].set(
        h0.astype(jnp.float32))

    cap = _vmem_capacity_bytes()
    weight_bytes = (wx.size + wh.size) * itemsize + b.size * 4
    act_bytes = ((x_p.size + h0_p.size) * 4
                 + L * B * H * jnp.dtype(out_dtype).itemsize)
    fused_bytes = 2 * (weight_bytes + act_bytes)     # conservative: 2x buffers
    use_fused = fused_bytes <= int(0.4 * cap)        # ~25 MiB v7x / ~51 MiB v5e,v6e

    if use_fused:
        # Single launch, single grid step; layer loop + vreg carry in-kernel.
        vmem_limit = int(min(cap - (2 << 20),
                             max(fused_bytes + (4 << 20), 16 << 20)))
        kernel = functools.partial(_gru_fused_kernel, H=H, S=S, num_layers=L)
        hn = pl.pallas_call(
            kernel,
            out_shape=jax.ShapeDtypeStruct((L, B, H), out_dtype),
            grid_spec=pltpu.PrefetchScalarGridSpec(
                num_scalar_prefetch=0,
                grid=(1,),
                in_specs=[
                    pl.BlockSpec((B, Kx), lambda i: (0, 0)),        # x
                    pl.BlockSpec((L, B, Kh), lambda i: (0, 0, 0)),  # h0
                    pl.BlockSpec((L, Kx, G), lambda i: (0, 0, 0)),  # W_x
                    pl.BlockSpec((L, Kh, G), lambda i: (0, 0, 0)),  # W_h
                    pl.BlockSpec((L, 1, G), lambda i: (0, 0, 0)),   # b
                ],
                out_specs=pl.BlockSpec((L, B, H), lambda i: (0, 0, 0)),
            ),
            compiler_params=pltpu.CompilerParams(
                dimension_semantics=("arbitrary",),
                vmem_limit_bytes=vmem_limit,
            ),
        )(x_p, h0_p, wx, wh, b)
    else:
        # Weight stack too big for VMEM: pipeline one layer per grid step and
        # deep-buffer the weight DMA stream across the serial layer chain.
        per_layer_w = (Kx + Kh) * G * itemsize + G * 4
        per_layer_act = (B * Kh + B * H) * 4
        need = (3 * per_layer_w + 2 * per_layer_act
                + B * Kx * (4 + itemsize) + (4 << 20))
        vmem_limit = int(min(cap - (2 << 20), max(need, 16 << 20)))

        def _wspec(shape, imap):
            try:
                return pl.BlockSpec(shape, imap, pipeline_mode=pl.Buffered(3))
            except Exception:
                return pl.BlockSpec(shape, imap)

        kernel = functools.partial(_gru_layer_grid_kernel, H=H, S=S)
        hn = pl.pallas_call(
            kernel,
            out_shape=jax.ShapeDtypeStruct((L, B, H), out_dtype),
            grid_spec=pltpu.PrefetchScalarGridSpec(
                num_scalar_prefetch=0,
                grid=(L,),
                in_specs=[
                    pl.BlockSpec((B, Kx), lambda l: (0, 0)),          # x (l==0)
                    pl.BlockSpec((None, B, Kh), lambda l: (l, 0, 0)),  # h0[l]
                    _wspec((None, Kx, G), lambda l: (l, 0, 0)),        # W_x[l]
                    _wspec((None, Kh, G), lambda l: (l, 0, 0)),        # W_h[l]
                    pl.BlockSpec((None, 1, G), lambda l: (l, 0, 0)),   # b[l]
                ],
                out_specs=pl.BlockSpec((None, B, H), lambda l: (l, 0, 0)),
                scratch_shapes=[pltpu.VMEM((B, Kx), wx.dtype)],        # carry
            ),
            compiler_params=pltpu.CompilerParams(
                dimension_semantics=("arbitrary",),
                vmem_limit_bytes=vmem_limit,
            ),
        )(x_p, h0_p, wx, wh, b)

    output = hn[-1]
    return output, hn


# ---------------------------------------------------------------------------
# Pure-JAX reference (PyTorch GRUCell semantics) and self-test
# ---------------------------------------------------------------------------
def _reference_forward(x, h0, raw_params):
    H = h0.shape[-1]
    hn = []
    output = x
    for i, p in enumerate(raw_params):
        gi = output @ p["w_ih"].T + p["b_ih"]
        gh = h0[i] @ p["w_hh"].T + p["b_hh"]
        r = jax.nn.sigmoid(gi[:, :H] + gh[:, :H])
        z = jax.nn.sigmoid(gi[:, H:2 * H] + gh[:, H:2 * H])
        n = jnp.tanh(gi[:, 2 * H:] + r * gh[:, 2 * H:])
        hn_i = (1.0 - z) * n + z * h0[i]
        hn.append(hn_i)
        output = hn_i
    return output, jnp.stack(hn)


if __name__ == "__main__":
    batch = 8
    input_size = 20
    hidden_size = 32
    num_layers = 3

    key = jax.random.PRNGKey(0)
    key, kx, kh, kp = jax.random.split(key, 4)

    x = jax.random.normal(kx, (batch, input_size), jnp.float32)
    h0 = jax.random.normal(kh, (num_layers, batch, hidden_size), jnp.float32)
    raw = init_stacking_gru_raw_params(kp, input_size, hidden_size, num_layers)

    ref_out, ref_hn = _reference_forward(x, h0, raw)

    # f32-matmul path: must match the reference tightly.
    packed_f32 = pack_stacking_gru_params(raw, input_size, hidden_size,
                                          matmul_dtype=jnp.float32)
    out_f32, hn_f32 = stacking_gru_cell_forward(x, h0, packed_f32)
    out_f32 = jax.block_until_ready(out_f32)
    hn_f32 = jax.block_until_ready(hn_f32)
    assert out_f32.shape == (batch, hidden_size)
    assert hn_f32.shape == (num_layers, batch, hidden_size)
    assert jnp.allclose(out_f32, ref_out, atol=1e-5, rtol=1e-5)
    assert jnp.allclose(hn_f32, ref_hn, atol=1e-5, rtol=1e-5)

    # Default path: bf16 matmul weights (all TPU gens); gate math stays f32.
    packed_bf16 = pack_stacking_gru_params(raw, input_size, hidden_size)
    out_bf16, hn_bf16 = stacking_gru_cell_forward(x, h0, packed_bf16)
    hn_bf16 = jax.block_until_ready(hn_bf16)
    assert hn_bf16.shape == (num_layers, batch, hidden_size)
    assert jnp.allclose(hn_bf16, ref_hn, atol=1e-1, rtol=1e-1)

    print("KERNEL_OK")
</pallas_src>

<mosaic_0001>
module attributes {stable_mosaic.version = 11 : i64} {
  func.func @_gru_fused_kernel(%arg0: i32, %arg1: memref<8x32xf32, #tpu.memory_space<vmem>>, %arg2: memref<3x8x32xf32, #tpu.memory_space<vmem>>, %arg3: memref<3x32x128xf32, #tpu.memory_space<vmem>>, %arg4: memref<3x32x128xf32, #tpu.memory_space<vmem>>, %arg5: memref<3x1x128xf32, #tpu.memory_space<vmem>>, %arg6: memref<3x8x32xf32, #tpu.memory_space<vmem>>) attributes {dimension_semantics = [#tpu.dimension_semantics<arbitrary>], iteration_bounds = array<i64: 1>, scalar_prefetch = 0 : i64, scratch_operands = 0 : i64, tpu.core_type = #tpu.core_type<tc>, window_params = [{pipeline_mode = #tpu.pipeline_mode<synchronous>, transform_indices = @transform_0, window_bounds = array<i64: 8, 32>}, {pipeline_mode = #tpu.pipeline_mode<synchronous>, transform_indices = @transform_1, window_bounds = array<i64: 3, 8, 32>}, {pipeline_mode = #tpu.pipeline_mode<synchronous>, transform_indices = @transform_2, window_bounds = array<i64: 3, 32, 128>}, {pipeline_mode = #tpu.pipeline_mode<synchronous>, transform_indices = @transform_3, window_bounds = array<i64: 3, 32, 128>}, {pipeline_mode = #tpu.pipeline_mode<synchronous>, transform_indices = @transform_4, window_bounds = array<i64: 3, 1, 128>}, {pipeline_mode = #tpu.pipeline_mode<synchronous>, transform_indices = @transform_5, window_bounds = array<i64: 3, 8, 32>}]} {
    %c0 = arith.constant 0 : index
    %c0_0 = arith.constant 0 : index
    %0 = vector.load %arg1[%c0, %c0_0] : memref<8x32xf32, #tpu.memory_space<vmem>>, vector<8x32xf32>
    %c0_i32 = arith.constant 0 : i32
    %1 = arith.index_cast %c0_i32 : i32 to index
    %c0_1 = arith.constant 0 : index
    %c0_2 = arith.constant 0 : index
    %2 = vector.load %arg2[%1, %c0_1, %c0_2] : memref<3x8x32xf32, #tpu.memory_space<vmem>>, vector<1x8x32xf32>
    %3 = vector.shape_cast %2 : vector<1x8x32xf32> to vector<8x32xf32>
    %4 = arith.index_cast %c0_i32 : i32 to index
    %c0_3 = arith.constant 0 : index
    %c0_4 = arith.constant 0 : index
    %5 = vector.load %arg3[%4, %c0_3, %c0_4] : memref<3x32x128xf32, #tpu.memory_space<vmem>>, vector<1x32x128xf32>
    %6 = vector.shape_cast %5 : vector<1x32x128xf32> to vector<32x128xf32>
    %cst = arith.constant dense<0.000000e+00> : vector<8x128xf32>
    %7 = tpu.matmul %0, %6, %cst {dimension_numbers = #tpu.dot_dimension_numbers<[1], [0], [0], [1], [0, 0, 1, 1], [], []>} : vector<8x32xf32>, vector<32x128xf32>, vector<8x128xf32> -> vector<8x128xf32>
    %8 = arith.index_cast %c0_i32 : i32 to index
    %c0_5 = arith.constant 0 : index
    %c0_6 = arith.constant 0 : index
    %9 = vector.load %arg4[%8, %c0_5, %c0_6] : memref<3x32x128xf32, #tpu.memory_space<vmem>>, vector<1x32x128xf32>
    %10 = vector.shape_cast %9 : vector<1x32x128xf32> to vector<32x128xf32>
    %cst_7 = arith.constant dense<0.000000e+00> : vector<8x128xf32>
    %11 = tpu.matmul %3, %10, %cst_7 {dimension_numbers = #tpu.dot_dimension_numbers<[1], [0], [0], [1], [0, 0, 1, 1], [], []>} : vector<8x32xf32>, vector<32x128xf32>, vector<8x128xf32> -> vector<8x128xf32>
    %12 = arith.addf %7, %11 : vector<8x128xf32>
    %13 = arith.index_cast %c0_i32 : i32 to index
    %c0_8 = arith.constant 0 : index
    %c0_9 = arith.constant 0 : index
    %14 = vector.load %arg5[%13, %c0_8, %c0_9] : memref<3x1x128xf32, #tpu.memory_space<vmem>>, vector<1x1x128xf32>
    %15 = vector.shape_cast %14 : vector<1x1x128xf32> to vector<1x128xf32>
    %16 = vector.broadcast %15 : vector<1x128xf32> to vector<8x128xf32>
    %17 = arith.addf %12, %16 : vector<8x128xf32>
    %18 = vector.extract_strided_slice %17 {offsets = [0, 0], sizes = [8, 32], strides = [1, 1]} : vector<8x128xf32> to vector<8x32xf32>
    %19 = arith.negf %18 : vector<8x32xf32>
    %20 = math.exp %19 : vector<8x32xf32>
    %cst_10 = arith.constant 1.000000e+00 : f32
    %21 = vector.broadcast %cst_10 : f32 to vector<8x32xf32>
    %22 = arith.addf %21, %20 : vector<8x32xf32>
    %23 = arith.divf %21, %22 : vector<8x32xf32>
    %24 = vector.extract_strided_slice %17 {offsets = [0, 32], sizes = [8, 32], strides = [1, 1]} : vector<8x128xf32> to vector<8x32xf32>
    %25 = arith.negf %24 : vector<8x32xf32>
    %26 = math.exp %25 : vector<8x32xf32>
    %cst_11 = arith.constant 1.000000e+00 : f32
    %27 = vector.broadcast %cst_11 : f32 to vector<8x32xf32>
    %28 = arith.addf %27, %26 : vector<8x32xf32>
    %29 = arith.divf %27, %28 : vector<8x32xf32>
    %30 = vector.extract_strided_slice %17 {offsets = [0, 64], sizes = [8, 32], strides = [1, 1]} : vector<8x128xf32> to vector<8x32xf32>
    %31 = vector.extract_strided_slice %17 {offsets = [0, 96], sizes = [8, 32], strides = [1, 1]} : vector<8x128xf32> to vector<8x32xf32>
    %32 = arith.mulf %23, %31 : vector<8x32xf32>
    %33 = arith.addf %30, %32 : vector<8x32xf32>
    %34 = math.tanh %33 : vector<8x32xf32>
    %cst_12 = arith.constant 1.000000e+00 : f32
    %35 = vector.broadcast %cst_12 : f32 to vector<8x32xf32>
    %36 = arith.subf %35, %29 : vector<8x32xf32>
    %37 = arith.mulf %36, %34 : vector<8x32xf32>
    %38 = arith.mulf %29, %3 : vector<8x32xf32>
    %39 = arith.addf %37, %38 : vector<8x32xf32>
    %40 = arith.index_cast %c0_i32 : i32 to index
    %c0_13 = arith.constant 0 : index
    %c0_14 = arith.constant 0 : index
    %41 = vector.load %arg6[%40, %c0_13, %c0_14] : memref<3x8x32xf32, #tpu.memory_space<vmem>>, vector<1x8x32xf32>
    %42 = vector.shape_cast %41 : vector<1x8x32xf32> to vector<8x32xf32>
    %43 = vector.shape_cast %39 : vector<8x32xf32> to vector<1x8x32xf32>
    tpu.vector_store %arg6[%40, %c0_13, %c0_14], %43 {strides = array<i32>} : memref<3x8x32xf32, #tpu.memory_space<vmem>>, vector<1x8x32xf32>,
    %c1_i32 = arith.constant 1 : i32
    %44 = arith.index_cast %c1_i32 : i32 to index
    %c0_15 = arith.constant 0 : index
    %c0_16 = arith.constant 0 : index
    %45 = vector.load %arg2[%44, %c0_15, %c0_16] : memref<3x8x32xf32, #tpu.memory_space<vmem>>, vector<1x8x32xf32>
    %46 = vector.shape_cast %45 : vector<1x8x32xf32> to vector<8x32xf32>
    %47 = arith.index_cast %c1_i32 : i32 to index
    %c0_17 = arith.constant 0 : index
    %c0_18 = arith.constant 0 : index
    %48 = vector.load %arg3[%47, %c0_17, %c0_18] : memref<3x32x128xf32, #tpu.memory_space<vmem>>, vector<1x32x128xf32>
    %49 = vector.shape_cast %48 : vector<1x32x128xf32> to vector<32x128xf32>
    %cst_19 = arith.constant dense<0.000000e+00> : vector<8x128xf32>
    %50 = tpu.matmul %39, %49, %cst_19 {dimension_numbers = #tpu.dot_dimension_numbers<[1], [0], [0], [1], [0, 0, 1, 1], [], []>} : vector<8x32xf32>, vector<32x128xf32>, vector<8x128xf32> -> vector<8x128xf32>
    %51 = arith.index_cast %c1_i32 : i32 to index
    %c0_20 = arith.constant 0 : index
    %c0_21 = arith.constant 0 : index
    %52 = vector.load %arg4[%51, %c0_20, %c0_21] : memref<3x32x128xf32, #tpu.memory_space<vmem>>, vector<1x32x128xf32>
    %53 = vector.shape_cast %52 : vector<1x32x128xf32> to vector<32x128xf32>
    %cst_22 = arith.constant dense<0.000000e+00> : vector<8x128xf32>
    %54 = tpu.matmul %46, %53, %cst_22 {dimension_numbers = #tpu.dot_dimension_numbers<[1], [0], [0], [1], [0, 0, 1, 1], [], []>} : vector<8x32xf32>, vector<32x128xf32>, vector<8x128xf32> -> vector<8x128xf32>
    %55 = arith.addf %50, %54 : vector<8x128xf32>
    %56 = arith.index_cast %c1_i32 : i32 to index
    %c0_23 = arith.constant 0 : index
    %c0_24 = arith.constant 0 : index
    %57 = vector.load %arg5[%56, %c0_23, %c0_24] : memref<3x1x128xf32, #tpu.memory_space<vmem>>, vector<1x1x128xf32>
    %58 = vector.shape_cast %57 : vector<1x1x128xf32> to vector<1x128xf32>
    %59 = vector.broadcast %58 : vector<1x128xf32> to vector<8x128xf32>
    %60 = arith.addf %55, %59 : vector<8x128xf32>
    %61 = vector.extract_strided_slice %60 {offsets = [0, 0], sizes = [8, 32], strides = [1, 1]} : vector<8x128xf32> to vector<8x32xf32>
    %62 = arith.negf %61 : vector<8x32xf32>
    %63 = math.exp %62 : vector<8x32xf32>
    %cst_25 = arith.constant 1.000000e+00 : f32
    %64 = vector.broadcast %cst_25 : f32 to vector<8x32xf32>
    %65 = arith.addf %64, %63 : vector<8x32xf32>
    %66 = arith.divf %64, %65 : vector<8x32xf32>
    %67 = vector.extract_strided_slice %60 {offsets = [0, 32], sizes = [8, 32], strides = [1, 1]} : vector<8x128xf32> to vector<8x32xf32>
    %68 = arith.negf %67 : vector<8x32xf32>
    %69 = math.exp %68 : vector<8x32xf32>
    %cst_26 = arith.constant 1.000000e+00 : f32
    %70 = vector.broadcast %cst_26 : f32 to vector<8x32xf32>
    %71 = arith.addf %70, %69 : vector<8x32xf32>
    %72 = arith.divf %70, %71 : vector<8x32xf32>
    %73 = vector.extract_strided_slice %60 {offsets = [0, 64], sizes = [8, 32], strides = [1, 1]} : vector<8x128xf32> to vector<8x32xf32>
    %74 = vector.extract_strided_slice %60 {offsets = [0, 96], sizes = [8, 32], strides = [1, 1]} : vector<8x128xf32> to vector<8x32xf32>
    %75 = arith.mulf %66, %74 : vector<8x32xf32>
    %76 = arith.addf %73, %75 : vector<8x32xf32>
    %77 = math.tanh %76 : vector<8x32xf32>
    %cst_27 = arith.constant 1.000000e+00 : f32
    %78 = vector.broadcast %cst_27 : f32 to vector<8x32xf32>
    %79 = arith.subf %78, %72 : vector<8x32xf32>
    %80 = arith.mulf %79, %77 : vector<8x32xf32>
    %81 = arith.mulf %72, %46 : vector<8x32xf32>
    %82 = arith.addf %80, %81 : vector<8x32xf32>
    %83 = arith.index_cast %c1_i32 : i32 to index
    %c0_28 = arith.constant 0 : index
    %c0_29 = arith.constant 0 : index
    %84 = vector.load %arg6[%83, %c0_28, %c0_29] : memref<3x8x32xf32, #tpu.memory_space<vmem>>, vector<1x8x32xf32>
    %85 = vector.shape_cast %84 : vector<1x8x32xf32> to vector<8x32xf32>
    %86 = vector.shape_cast %82 : vector<8x32xf32> to vector<1x8x32xf32>
    tpu.vector_store %arg6[%83, %c0_28, %c0_29], %86 {strides = array<i32>} : memref<3x8x32xf32, #tpu.memory_space<vmem>>, vector<1x8x32xf32>,
    %c2_i32 = arith.constant 2 : i32
    %87 = arith.index_cast %c2_i32 : i32 to index
    %c0_30 = arith.constant 0 : index
    %c0_31 = arith.constant 0 : index
    %88 = vector.load %arg2[%87, %c0_30, %c0_31] : memref<3x8x32xf32, #tpu.memory_space<vmem>>, vector<1x8x32xf32>
    %89 = vector.shape_cast %88 : vector<1x8x32xf32> to vector<8x32xf32>
    %90 = arith.index_cast %c2_i32 : i32 to index
    %c0_32 = arith.constant 0 : index
    %c0_33 = arith.constant 0 : index
    %91 = vector.load %arg3[%90, %c0_32, %c0_33] : memref<3x32x128xf32, #tpu.memory_space<vmem>>, vector<1x32x128xf32>
    %92 = vector.shape_cast %91 : vector<1x32x128xf32> to vector<32x128xf32>
    %cst_34 = arith.constant dense<0.000000e+00> : vector<8x128xf32>
    %93 = tpu.matmul %82, %92, %cst_34 {dimension_numbers = #tpu.dot_dimension_numbers<[1], [0], [0], [1], [0, 0, 1, 1], [], []>} : vector<8x32xf32>, vector<32x128xf32>, vector<8x128xf32> -> vector<8x128xf32>
    %94 = arith.index_cast %c2_i32 : i32 to index
    %c0_35 = arith.constant 0 : index
    %c0_36 = arith.constant 0 : index
    %95 = vector.load %arg4[%94, %c0_35, %c0_36] : memref<3x32x128xf32, #tpu.memory_space<vmem>>, vector<1x32x128xf32>
    %96 = vector.shape_cast %95 : vector<1x32x128xf32> to vector<32x128xf32>
    %cst_37 = arith.constant dense<0.000000e+00> : vector<8x128xf32>
    %97 = tpu.matmul %89, %96, %cst_37 {dimension_numbers = #tpu.dot_dimension_numbers<[1], [0], [0], [1], [0, 0, 1, 1], [], []>} : vector<8x32xf32>, vector<32x128xf32>, vector<8x128xf32> -> vector<8x128xf32>
    %98 = arith.addf %93, %97 : vector<8x128xf32>
    %99 = arith.index_cast %c2_i32 : i32 to index
    %c0_38 = arith.constant 0 : index
    %c0_39 = arith.constant 0 : index
    %100 = vector.load %arg5[%99, %c0_38, %c0_39] : memref<3x1x128xf32, #tpu.memory_space<vmem>>, vector<1x1x128xf32>
    %101 = vector.shape_cast %100 : vector<1x1x128xf32> to vector<1x128xf32>
    %102 = vector.broadcast %101 : vector<1x128xf32> to vector<8x128xf32>
    %103 = arith.addf %98, %102 : vector<8x128xf32>
    %104 = vector.extract_strided_slice %103 {offsets = [0, 0], sizes = [8, 32], strides = [1, 1]} : vector<8x128xf32> to vector<8x32xf32>
    %105 = arith.negf %104 : vector<8x32xf32>
    %106 = math.exp %105 : vector<8x32xf32>
    %cst_40 = arith.constant 1.000000e+00 : f32
    %107 = vector.broadcast %cst_40 : f32 to vector<8x32xf32>
    %108 = arith.addf %107, %106 : vector<8x32xf32>
    %109 = arith.divf %107, %108 : vector<8x32xf32>
    %110 = vector.extract_strided_slice %103 {offsets = [0, 32], sizes = [8, 32], strides = [1, 1]} : vector<8x128xf32> to vector<8x32xf32>
    %111 = arith.negf %110 : vector<8x32xf32>
    %112 = math.exp %111 : vector<8x32xf32>
    %cst_41 = arith.constant 1.000000e+00 : f32
    %113 = vector.broadcast %cst_41 : f32 to vector<8x32xf32>
    %114 = arith.addf %113, %112 : vector<8x32xf32>
    %115 = arith.divf %113, %114 : vector<8x32xf32>
    %116 = vector.extract_strided_slice %103 {offsets = [0, 64], sizes = [8, 32], strides = [1, 1]} : vector<8x128xf32> to vector<8x32xf32>
    %117 = vector.extract_strided_slice %103 {offsets = [0, 96], sizes = [8, 32], strides = [1, 1]} : vector<8x128xf32> to vector<8x32xf32>
    %118 = arith.mulf %109, %117 : vector<8x32xf32>
    %119 = arith.addf %116, %118 : vector<8x32xf32>
    %120 = math.tanh %119 : vector<8x32xf32>
    %cst_42 = arith.constant 1.000000e+00 : f32
    %121 = vector.broadcast %cst_42 : f32 to vector<8x32xf32>
    %122 = arith.subf %121, %115 : vector<8x32xf32>
    %123 = arith.mulf %122, %120 : vector<8x32xf32>
    %124 = arith.mulf %115, %89 : vector<8x32xf32>
    %125 = arith.addf %123, %124 : vector<8x32xf32>
    %126 = arith.index_cast %c2_i32 : i32 to index
    %c0_43 = arith.constant 0 : index
    %c0_44 = arith.constant 0 : index
    %127 = vector.load %arg6[%126, %c0_43, %c0_44] : memref<3x8x32xf32, #tpu.memory_space<vmem>>, vector<1x8x32xf32>
    %128 = vector.shape_cast %127 : vector<1x8x32xf32> to vector<8x32xf32>
    %129 = vector.shape_cast %125 : vector<8x32xf32> to vector<1x8x32xf32>
    tpu.vector_store %arg6[%126, %c0_43, %c0_44], %129 {strides = array<i32>} : memref<3x8x32xf32, #tpu.memory_space<vmem>>, vector<1x8x32xf32>,
    %c3_i32 = arith.constant 3 : i32
    return
  }
  func.func @transform_0(%arg0: i32) -> (i32, i32) {
    %c0_i32 = arith.constant 0 : i32
    %c0_i32_0 = arith.constant 0 : i32
    %c0_i32_1 = arith.constant 0 : i32
    return %c0_i32, %c0_i32_0 : i32, i32
  }
  func.func @transform_1(%arg0: i32) -> (i32, i32, i32) {
    %c0_i32 = arith.constant 0 : i32
    %c0_i32_0 = arith.constant 0 : i32
    %c0_i32_1 = arith.constant 0 : i32
    %c0_i32_2 = arith.constant 0 : i32
    return %c0_i32, %c0_i32_0, %c0_i32_1 : i32, i32, i32
  }
  func.func @transform_2(%arg0: i32) -> (i32, i32, i32) {
    %c0_i32 = arith.constant 0 : i32
    %c0_i32_0 = arith.constant 0 : i32
    %c0_i32_1 = arith.constant 0 : i32
    %c0_i32_2 = arith.constant 0 : i32
    return %c0_i32, %c0_i32_0, %c0_i32_1 : i32, i32, i32
  }
  func.func @transform_3(%arg0: i32) -> (i32, i32, i32) {
    %c0_i32 = arith.constant 0 : i32
    %c0_i32_0 = arith.constant 0 : i32
    %c0_i32_1 = arith.constant 0 : i32
    %c0_i32_2 = arith.constant 0 : i32
    return %c0_i32, %c0_i32_0, %c0_i32_1 : i32, i32, i32
  }
  func.func @transform_4(%arg0: i32) -> (i32, i32, i32) {
    %c0_i32 = arith.constant 0 : i32
    %c0_i32_0 = arith.constant 0 : i32
    %c0_i32_1 = arith.constant 0 : i32
    %c0_i32_2 = arith.constant 0 : i32
    return %c0_i32, %c0_i32_0, %c0_i32_1 : i32, i32, i32
  }
  func.func @transform_5(%arg0: i32) -> (i32, i32, i32) {
    %c0_i32 = arith.constant 0 : i32
    %c0_i32_0 = arith.constant 0 : i32
    %c0_i32_1 = arith.constant 0 : i32
    %c0_i32_2 = arith.constant 0 : i32
    return %c0_i32, %c0_i32_0, %c0_i32_1 : i32, i32, i32
  }
}

</mosaic_0001>

<llo_original>
// kernel: tpu_custom_call.1
$region0: #{tpu_custom_call.1}
  #allocation0 [shape = 'u32[]', space=smem, size = 0x4, offset = 0x4, fixed_abs, tag = 'smem constant byte address 0x4 - core index']
  #allocation1 [shape = 'u32[144,128]{1,0:T(1,128)}', space=vmem, size = 0x12000, scoped, tag = 'internal scratch']
  %s0 = inlined_call_operand.hbm [shape: f32[8,32], index: 0, kind: input, shape index: {}]
  %s1 = inlined_call_operand.hbm [shape: f32[3,8,32], index: 1, kind: input, shape index: {}]
  %s2 = inlined_call_operand.hbm [shape: f32[3,32,128], index: 2, kind: input, shape index: {}]
  %s3 = inlined_call_operand.hbm [shape: f32[3,32,128], index: 3, kind: input, shape index: {}]
  %s4 = inlined_call_operand.vmem [shape: f32[3,1,128], index: 4, kind: input, shape index: {}]
  %s5 = inlined_call_operand.hbm [shape: f32[3,8,32], index: 5, kind: output, shape index: {}]
  %s6 = sld [smem:[#allocation0]]
  $region46: #{tpu_custom_call.1} parent=0
    _
  %s8 = ssub.s32 1, %s6
  %s9 = scalar_select 0, %s8, %s6
  $region1: #{tpu_custom_call.1} parent=0
    #allocation2 [shape = 'u8[4096]{0}', space=vmem, size = 0x1000, scoped, tag = 'input window, operand 0, single buffered']
    #allocation3 [shape = 's32[1]{0}', space=sflag, size = 0x4, scoped, tag = 'scoped memory for tpu_custom_call.1']
    #allocation4 [shape = 's32[1]{0}', space=sflag, size = 0x4, scoped, tag = 'scoped memory for tpu_custom_call.1']
    #allocation5 [shape = 'u8[12288]{0}', space=vmem, size = 0x3000, scoped, tag = 'input window, operand 1, single buffered']
    #allocation6 [shape = 's32[1]{0}', space=sflag, size = 0x4, scoped, tag = 'scoped memory for tpu_custom_call.1']
    #allocation7 [shape = 'u8[49152]{0}', space=vmem, size = 0xc000, scoped, tag = 'input window, operand 2, single buffered']
    #allocation8 [shape = 'u8[49152]{0}', space=vmem, size = 0xc000, scoped, tag = 'input window, operand 3, single buffered']
    #allocation9 [shape = 's32[1]{0}', space=sflag, size = 0x4, scoped, tag = 'scoped memory for tpu_custom_call.1']
    #allocation10 [shape = 'u8[12288]{0}', space=vmem, size = 0x3000, scoped, tag = 'output window, operand 0, single buffered']
    %10 = vsyncpa [#allocation3], 0
    %11 = vsyncpa [#allocation6], 0
    %12 = vsyncpa [#allocation9], 0
    %13 = vsyncpa [#allocation4], 0
    // Predicated region
    $region2: #{tpu_custom_call.1} parent=1 // pred_check
      _
    $region3: #{tpu_custom_call.1} parent=1 // pred_check_branch
      %15 = sbr.rel (0) target = $region5
    $region4: #{tpu_custom_call.1} parent=1 // pred_region
      %s17 = ssub.s32 128, 128
      %18 = vsyncadd [#allocation3], %s17
      %s20 = sshll.u32 [#allocation2], 4
      %s21 = int_to_ptr.vmem [resolvable:$true] %s20
      %23 = dma.hbm_to_vmem [thread:$0]  %s0, 128, %s21, [#allocation3]
    $region5: #{tpu_custom_call.1} parent=1 // pred_fallthru
      _
    // Predicated region
    $region6: #{tpu_custom_call.1} parent=1 // pred_check
      _
    $region7: #{tpu_custom_call.1} parent=1 // pred_check_branch
      %25 = sbr.rel (0) target = $region9
    $region8: #{tpu_custom_call.1} parent=1 // pred_region
      %s27 = ssub.s32 384, 384
      %28 = vsyncadd [#allocation6], %s27
      %s29 = sshll.u32 [#allocation5], 4
      %s30 = int_to_ptr.vmem [resolvable:$true] %s29
      %35 = dma.hbm_to_vmem [thread:$0]  %s1, 384, %s30, [#allocation6], 128, 128, 8
    $region9: #{tpu_custom_call.1} parent=1 // pred_fallthru
      _
    // Predicated region
    $region10: #{tpu_custom_call.1} parent=1 // pred_check
      _
    $region11: #{tpu_custom_call.1} parent=1 // pred_check_branch
      %37 = sbr.rel (0) target = $region13
    $region12: #{tpu_custom_call.1} parent=1 // pred_region
      %s39 = ssub.s32 1536, 1536
      %40 = vsyncadd [#allocation6], %s39
      %s41 = sshll.u32 [#allocation7], 4
      %s42 = int_to_ptr.vmem [resolvable:$true] %s41
      %47 = dma.hbm_to_vmem [thread:$0]  %s2, 1536, %s42, [#allocation6], 128, 128, 8
    $region13: #{tpu_custom_call.1} parent=1 // pred_fallthru
      _
    // Predicated region
    $region14: #{tpu_custom_call.1} parent=1 // pred_check
      _
    $region15: #{tpu_custom_call.1} parent=1 // pred_check_branch
      %49 = sbr.rel (0) target = $region17
    $region16: #{tpu_custom_call.1} parent=1 // pred_region
      %s51 = ssub.s32 1536, 1536
      %52 = vsyncadd [#allocation9], %s51
      %s53 = sshll.u32 [#allocation8], 4
      %s54 = int_to_ptr.vmem [resolvable:$true] %s53
      %59 = dma.hbm_to_vmem [thread:$0]  %s3, 1536, %s54, [#allocation9], 128, 128, 8
    $region17: #{tpu_custom_call.1} parent=1 // pred_fallthru
      _
    // Predicated region
    $region18: #{tpu_custom_call.1} parent=1 // pred_check
      _
    $region19: #{tpu_custom_call.1} parent=1 // pred_check_branch
      %61 = sbr.rel (0) target = $region21
    $region20: #{tpu_custom_call.1} parent=1 // pred_region
      _
    $region21: #{tpu_custom_call.1} parent=1 // pred_fallthru
      _
    // Predicated region
    $region22: #{tpu_custom_call.1} parent=1 // pred_check
      _
    $region23: #{tpu_custom_call.1} parent=1 // pred_check_branch
      %63 = sbr.rel (0) target = $region25
    $region24: #{tpu_custom_call.1} parent=1 // pred_region
      %64 = dma.done [#allocation3], 128
    $region25: #{tpu_custom_call.1} parent=1 // pred_fallthru
      _
    // Predicated region
    $region26: #{tpu_custom_call.1} parent=1 // pred_check
      _
    $region27: #{tpu_custom_call.1} parent=1 // pred_check_branch
      %66 = sbr.rel (0) target = $region29
    $region28: #{tpu_custom_call.1} parent=1 // pred_region
      %67 = dma.done [#allocation6], 384
    $region29: #{tpu_custom_call.1} parent=1 // pred_fallthru
      _
    // Predicated region
    $region30: #{tpu_custom_call.1} parent=1 // pred_check
      _
    $region31: #{tpu_custom_call.1} parent=1 // pred_check_branch
      %69 = sbr.rel (0) target = $region33
    $region32: #{tpu_custom_call.1} parent=1 // pred_region
      %70 = dma.done [#allocation6], 1536
    $region33: #{tpu_custom_call.1} parent=1 // pred_fallthru
      _
    // Predicated region
    $region34: #{tpu_custom_call.1} parent=1 // pred_check
      _
    $region35: #{tpu_custom_call.1} parent=1 // pred_check_branch
      %72 = sbr.rel (0) target = $region37
    $region36: #{tpu_custom_call.1} parent=1 // pred_region
      %73 = dma.done [#allocation9], 1536
    $region37: #{tpu_custom_call.1} parent=1 // pred_fallthru
      _
    %v74 = vld [vmem:[#allocation2] sm:$0xff]
    %v75 = vld [vmem:[#allocation5] sm:$0xff]
    %v76 = vld [vmem:[#allocation7] sm:$0xff]
    %v77 = vld [vmem:[#allocation7 + $0x8] sm:$0xff]
    %v78 = vld [vmem:[#allocation7 + $0x10] sm:$0xff]
    %v79 = vld [vmem:[#allocation7 + $0x18] sm:$0xff]
    %v80 = vld [vmem:[#allocation8] sm:$0xff]
    %v81 = vld [vmem:[#allocation8 + $0x8] sm:$0xff]
    %v82 = vld [vmem:[#allocation8 + $0x10] sm:$0xff]
    %v83 = vld [vmem:[#allocation8 + $0x18] sm:$0xff]
    %vm84 = vcmask 261120
    %v86 = vsel %vm84, %v75, 0
    %88 = vmatprep.subr.mxu0 0.0
    %89 = vmatpush1.msra.mxu0 %v80
    %90 = vmatprep.subr.mxu0 0.0
    %91 = vmatpush1.msra.mxu0 %v81
    %92 = vmatprep.subr.mxu0 0.0
    %93 = vmatpush1.msra.mxu0 %v82
    %94 = vmatprep.subr.mxu0 0.0
    %95 = vmatpush1.msra.mxu0 %v83
    %96 = vmatprep.subr.mxu0 0.0
    %97 = vmatpush1.msra.mxu0 0.0
    %98 = vmatprep.subr.mxu0 0.0
    %99 = vmatpush1.msra.mxu0 0.0
    %100 = vmatprep.subr.mxu0 0.0
    %101 = vmatpush1.msra.mxu0 0.0
    %102 = vmatprep.subr.mxu0 0.0
    %103 = vmatpush1.msra.mxu0 0.0
    %104 = vmatprep.subr.mxu0 0.0
    %105 = vmatpush1.msra.mxu0 0.0
    %106 = vmatprep.subr.mxu0 0.0
    %107 = vmatpush1.msra.mxu0 0.0
    %108 = vmatprep.subr.mxu0 0.0
    %109 = vmatpush1.msra.mxu0 0.0
    %110 = vmatprep.subr.mxu0 0.0
    %111 = vmatpush1.msra.mxu0 0.0
    %112 = vmatprep.subr.mxu0 0.0
    %113 = vmatpush1.msra.mxu0 0.0
    %114 = vmatprep.subr.mxu0 0.0
    %115 = vmatpush1.msra.mxu0 0.0
    %116 = vmatprep.subr.mxu0 0.0
    %117 = vmatpush1.msra.mxu0 0.0
    %118 = vmatprep.subr.mxu0 0.0
    %119 = vmatpush1.msra.mxu0 0.0
    %120 = vmatprep.subr.mxu0 0.0
    %121 = vmatpush1.msra.mxu0 0.0
    %122 = vmatprep.subr.mxu0 0.0
    %123 = vmatpush1.msra.mxu0 0.0
    %124 = vmatprep.subr.mxu0 0.0
    %125 = vmatpush1.msra.mxu0 0.0
    %126 = vmatprep.subr.mxu0 0.0
    %127 = vmatpush1.msra.mxu0 0.0
    %128 = vmatprep.subr.mxu0 0.0
    %129 = vmatpush1.msra.mxu0 0.0
    %130 = vmatprep.subr.mxu0 0.0
    %131 = vmatpush1.msra.mxu0 0.0
    %132 = vmatprep.subr.mxu0 0.0
    %133 = vmatpush1.msra.mxu0 0.0
    %134 = vmatprep.subr.mxu0 0.0
    %135 = vmatpush1.msra.mxu0 0.0
    %136 = vmatprep.subr.mxu0 0.0
    %137 = vmatpush1.msra.mxu0 0.0
    %138 = vmatprep.subr.mxu0 0.0
    %139 = vmatpush1.msra.mxu0 0.0
    %140 = vmatprep.subr.mxu0 0.0
    %141 = vmatpush1.msra.mxu0 0.0
    %142 = vmatprep.subr.mxu0 0.0
    %143 = vmatpush1.msra.mxu0 0.0
    %144 = vmatprep.subr.mxu0 0.0
    %145 = vmatpush1.msra.mxu0 0.0
    %146 = vmatprep.subr.mxu0 0.0
    %147 = vmatpush1.msra.mxu0 0.0
    %148 = vmatprep.subr.mxu0 0.0
    %149 = vmatpush1.msra.mxu0 0.0
    %150 = vmatprep.subr.mxu0 0.0
    %151 = vmatpush1.msra.mxu0 0.0
    %152 = vmatprep.mubr.f32.mxu0 0.0
    %153 = vmatmul.mubr.f32.gmra.mrb[0].mxu0 %v86
    %v154 = vpop.f32.mrb[0].mxu0
    %v155 = vadd.f32 0.0, %v154
    %v156 = vpop.f32.mrb[0].mxu0
    %157 = vdwg.mxu0
    %v159 = vsel %vm84, %v74, 0
    %161 = vmatprep.subr.mxu0 0.0
    %162 = vmatpush1.msra.mxu0 %v76
    %163 = vmatprep.subr.mxu0 0.0
    %164 = vmatpush1.msra.mxu0 %v77
    %165 = vmatprep.subr.mxu0 0.0
    %166 = vmatpush1.msra.mxu0 %v78
    %167 = vmatprep.subr.mxu0 0.0
    %168 = vmatpush1.msra.mxu0 %v79
    %169 = vmatprep.subr.mxu0 0.0
    %170 = vmatpush1.msra.mxu0 0.0
    %171 = vmatprep.subr.mxu0 0.0
    %172 = vmatpush1.msra.mxu0 0.0
    %173 = vmatprep.subr.mxu0 0.0
    %174 = vmatpush1.msra.mxu0 0.0
    %175 = vmatprep.subr.mxu0 0.0
    %176 = vmatpush1.msra.mxu0 0.0
    %177 = vmatprep.subr.mxu0 0.0
    %178 = vmatpush1.msra.mxu0 0.0
    %179 = vmatprep.subr.mxu0 0.0
    %180 = vmatpush1.msra.mxu0 0.0
    %181 = vmatprep.subr.mxu0 0.0
    %182 = vmatpush1.msra.mxu0 0.0
    %183 = vmatprep.subr.mxu0 0.0
    %184 = vmatpush1.msra.mxu0 0.0
    %185 = vmatprep.subr.mxu0 0.0
    %186 = vmatpush1.msra.mxu0 0.0
    %187 = vmatprep.subr.mxu0 0.0
    %188 = vmatpush1.msra.mxu0 0.0
    %189 = vmatprep.subr.mxu0 0.0
    %190 = vmatpush1.msra.mxu0 0.0
    %191 = vmatprep.subr.mxu0 0.0
    %192 = vmatpush1.msra.mxu0 0.0
    %193 = vmatprep.subr.mxu0 0.0
    %194 = vmatpush1.msra.mxu0 0.0
    %195 = vmatprep.subr.mxu0 0.0
    %196 = vmatpush1.msra.mxu0 0.0
    %197 = vmatprep.subr.mxu0 0.0
    %198 = vmatpush1.msra.mxu0 0.0
    %199 = vmatprep.subr.mxu0 0.0
    %200 = vmatpush1.msra.mxu0 0.0
    %201 = vmatprep.subr.mxu0 0.0
    %202 = vmatpush1.msra.mxu0 0.0
    %203 = vmatprep.subr.mxu0 0.0
    %204 = vmatpush1.msra.mxu0 0.0
    %205 = vmatprep.subr.mxu0 0.0
    %206 = vmatpush1.msra.mxu0 0.0
    %207 = vmatprep.subr.mxu0 0.0
    %208 = vmatpush1.msra.mxu0 0.0
    %209 = vmatprep.subr.mxu0 0.0
    %210 = vmatpush1.msra.mxu0 0.0
    %211 = vmatprep.subr.mxu0 0.0
    %212 = vmatpush1.msra.mxu0 0.0
    %213 = vmatprep.subr.mxu0 0.0
    %214 = vmatpush1.msra.mxu0 0.0
    %215 = vmatprep.subr.mxu0 0.0
    %216 = vmatpush1.msra.mxu0 0.0
    %217 = vmatprep.subr.mxu0 0.0
    %218 = vmatpush1.msra.mxu0 0.0
    %219 = vmatprep.subr.mxu0 0.0
    %220 = vmatpush1.msra.mxu0 0.0
    %221 = vmatprep.subr.mxu0 0.0
    %222 = vmatpush1.msra.mxu0 0.0
    %223 = vmatprep.subr.mxu0 0.0
    %224 = vmatpush1.msra.mxu0 0.0
    %225 = vmatprep.mubr.f32.mxu0 0.0
    %226 = vmatmul.mubr.f32.gmra.mrb[0].mxu0 %v159
    %v227 = vpop.f32.mrb[0].mxu0
    %v228 = vadd.f32 %v155, %v227
    %v229 = vpop.f32.mrb[0].mxu0
    %230 = vdwg.mxu0
    %v231 = vld [vmem:[%s4] sm:$0x1]
    %v233 = vlaneseq
    %v234 = vshrl.u32 %v233, 7
    %v235 = vsub.s32 0, %v234
    %v236 = vrot.slane %v231, %v235
    %v238 = vadd.f32 %v228, %v236
    %v239 = vxor.u32 %v238, 2147483648
    %v240 = vmul.f32 %v239, 1.442695
    %v241 = vpow.pop %v240
    %v242 = vadd.f32 %v241, 1.0
    %v243 = vrcp.pop %v242
    %v244 = vmul.f32 1.0, %v243
    %246 = vrot.lane.b32.xlu0 %v238, 32
    %v247 = vpop.permute.xlu0 %246
    %v249 = vmul.f32 %v244, %v247
    %251 = vrot.lane.b32.xlu0 %v249, 64
    %v252 = vpop.permute.xlu0 %251
    %v254 = vadd.f32 %v238, %v252
    %v255 = vtanh.pop %v254
    %v256 = vsub.f32 1.0, %v244
    %258 = vrot.lane.b32.xlu0 %v255, 96
    %v259 = vpop.permute.xlu0 %258
    %v261 = vmul.f32 %v256, %v259
    %262 = vrot.lane.b32.xlu0 %v75, 32
    %v263 = vpop.permute.xlu0 %262
    %v265 = vmul.f32 %v244, %v263
    %v266 = vadd.f32 %v261, %v265
    %268 = vrot.lane.b32.xlu0 %v266, 96
    %v269 = vpop.permute.xlu0 %268
    %271 = vst.msk [vmem:[#allocation10] sm:$0xff] %vm84, %v269
    %s272 = scalar_lea.vmem [#allocation5], 8
    %v273 = vld [vmem:[%s272] sm:$0xff]
    %s274 = scalar_lea.vmem [#allocation7], 32
    %v275 = vld [vmem:[%s274] sm:$0xff]
    %v276 = vld [vmem:[%s274 + $0x8] sm:$0xff]
    %v277 = vld [vmem:[%s274 + $0x10] sm:$0xff]
    %v278 = vld [vmem:[%s274 + $0x18] sm:$0xff]
    %s279 = scalar_lea.vmem [#allocation8], 32
    %v280 = vld [vmem:[%s279] sm:$0xff]
    %v281 = vld [vmem:[%s279 + $0x8] sm:$0xff]
    %v282 = vld [vmem:[%s279 + $0x10] sm:$0xff]
    %v283 = vld [vmem:[%s279 + $0x18] sm:$0xff]
    %v285 = vsel %vm84, %v273, 0
    %287 = vmatprep.subr.mxu0 0.0
    %288 = vmatpush1.msra.mxu0 %v280
    %289 = vmatprep.subr.mxu0 0.0
    %290 = vmatpush1.msra.mxu0 %v281
    %291 = vmatprep.subr.mxu0 0.0
    %292 = vmatpush1.msra.mxu0 %v282
    %293 = vmatprep.subr.mxu0 0.0
    %294 = vmatpush1.msra.mxu0 %v283
    %295 = vmatprep.subr.mxu0 0.0
    %296 = vmatpush1.msra.mxu0 0.0
    %297 = vmatprep.subr.mxu0 0.0
    %298 = vmatpush1.msra.mxu0 0.0
    %299 = vmatprep.subr.mxu0 0.0
    %300 = vmatpush1.msra.mxu0 0.0
    %301 = vmatprep.subr.mxu0 0.0
    %302 = vmatpush1.msra.mxu0 0.0
    %303 = vmatprep.subr.mxu0 0.0
    %304 = vmatpush1.msra.mxu0 0.0
    %305 = vmatprep.subr.mxu0 0.0
    %306 = vmatpush1.msra.mxu0 0.0
    %307 = vmatprep.subr.mxu0 0.0
    %308 = vmatpush1.msra.mxu0 0.0
    %309 = vmatprep.subr.mxu0 0.0
    %310 = vmatpush1.msra.mxu0 0.0
    %311 = vmatprep.subr.mxu0 0.0
    %312 = vmatpush1.msra.mxu0 0.0
    %313 = vmatprep.subr.mxu0 0.0
    %314 = vmatpush1.msra.mxu0 0.0
    %315 = vmatprep.subr.mxu0 0.0
    %316 = vmatpush1.msra.mxu0 0.0
    %317 = vmatprep.subr.mxu0 0.0
    %318 = vmatpush1.msra.mxu0 0.0
    %319 = vmatprep.subr.mxu0 0.0
    %320 = vmatpush1.msra.mxu0 0.0
    %321 = vmatprep.subr.mxu0 0.0
    %322 = vmatpush1.msra.mxu0 0.0
    %323 = vmatprep.subr.mxu0 0.0
    %324 = vmatpush1.msra.mxu0 0.0
    %325 = vmatprep.subr.mxu0 0.0
    %326 = vmatpush1.msra.mxu0 0.0
    %327 = vmatprep.subr.mxu0 0.0
    %328 = vmatpush1.msra.mxu0 0.0
    %329 = vmatprep.subr.mxu0 0.0
    %330 = vmatpush1.msra.mxu0 0.0
    %331 = vmatprep.subr.mxu0 0.0
    %332 = vmatpush1.msra.mxu0 0.0
    %333 = vmatprep.subr.mxu0 0.0
    %334 = vmatpush1.msra.mxu0 0.0
    %335 = vmatprep.subr.mxu0 0.0
    %336 = vmatpush1.msra.mxu0 0.0
    %337 = vmatprep.subr.mxu0 0.0
    %338 = vmatpush1.msra.mxu0 0.0
    %339 = vmatprep.subr.mxu0 0.0
    %340 = vmatpush1.msra.mxu0 0.0
    %341 = vmatprep.subr.mxu0 0.0
    %342 = vmatpush1.msra.mxu0 0.0
    %343 = vmatprep.subr.mxu0 0.0
    %344 = vmatpush1.msra.mxu0 0.0
    %345 = vmatprep.subr.mxu0 0.0
    %346 = vmatpush1.msra.mxu0 0.0
    %347 = vmatprep.subr.mxu0 0.0
    %348 = vmatpush1.msra.mxu0 0.0
    %349 = vmatprep.subr.mxu0 0.0
    %350 = vmatpush1.msra.mxu0 0.0
    %351 = vmatprep.mubr.f32.mxu0 0.0
    %352 = vmatmul.mubr.f32.gmra.mrb[0].mxu0 %v285
    %v353 = vpop.f32.mrb[0].mxu0
    %v354 = vadd.f32 0.0, %v353
    %v355 = vpop.f32.mrb[0].mxu0
    %356 = vdwg.mxu0
    %v357 = vsel %vm84, %v269, 0
    %359 = vmatprep.subr.mxu0 0.0
    %360 = vmatpush1.msra.mxu0 %v275
    %361 = vmatprep.subr.mxu0 0.0
    %362 = vmatpush1.msra.mxu0 %v276
    %363 = vmatprep.subr.mxu0 0.0
    %364 = vmatpush1.msra.mxu0 %v277
    %365 = vmatprep.subr.mxu0 0.0
    %366 = vmatpush1.msra.mxu0 %v278
    %367 = vmatprep.subr.mxu0 0.0
    %368 = vmatpush1.msra.mxu0 0.0
    %369 = vmatprep.subr.mxu0 0.0
    %370 = vmatpush1.msra.mxu0 0.0
    %371 = vmatprep.subr.mxu0 0.0
    %372 = vmatpush1.msra.mxu0 0.0
    %373 = vmatprep.subr.mxu0 0.0
    %374 = vmatpush1.msra.mxu0 0.0
    %375 = vmatprep.subr.mxu0 0.0
    %376 = vmatpush1.msra.mxu0 0.0
    %377 = vmatprep.subr.mxu0 0.0
    %378 = vmatpush1.msra.mxu0 0.0
    %379 = vmatprep.subr.mxu0 0.0
    %380 = vmatpush1.msra.mxu0 0.0
    %381 = vmatprep.subr.mxu0 0.0
    %382 = vmatpush1.msra.mxu0 0.0
    %383 = vmatprep.subr.mxu0 0.0
    %384 = vmatpush1.msra.mxu0 0.0
    %385 = vmatprep.subr.mxu0 0.0
    %386 = vmatpush1.msra.mxu0 0.0
    %387 = vmatprep.subr.mxu0 0.0
    %388 = vmatpush1.msra.mxu0 0.0
    %389 = vmatprep.subr.mxu0 0.0
    %390 = vmatpush1.msra.mxu0 0.0
    %391 = vmatprep.subr.mxu0 0.0
    %392 = vmatpush1.msra.mxu0 0.0
    %393 = vmatprep.subr.mxu0 0.0
    %394 = vmatpush1.msra.mxu0 0.0
    %395 = vmatprep.subr.mxu0 0.0
    %396 = vmatpush1.msra.mxu0 0.0
    %397 = vmatprep.subr.mxu0 0.0
    %398 = vmatpush1.msra.mxu0 0.0
    %399 = vmatprep.subr.mxu0 0.0
    %400 = vmatpush1.msra.mxu0 0.0
    %401 = vmatprep.subr.mxu0 0.0
    %402 = vmatpush1.msra.mxu0 0.0
    %403 = vmatprep.subr.mxu0 0.0
    %404 = vmatpush1.msra.mxu0 0.0
    %405 = vmatprep.subr.mxu0 0.0
    %406 = vmatpush1.msra.mxu0 0.0
    %407 = vmatprep.subr.mxu0 0.0
    %408 = vmatpush1.msra.mxu0 0.0
    %409 = vmatprep.subr.mxu0 0.0
    %410 = vmatpush1.msra.mxu0 0.0
    %411 = vmatprep.subr.mxu0 0.0
    %412 = vmatpush1.msra.mxu0 0.0
    %413 = vmatprep.subr.mxu0 0.0
    %414 = vmatpush1.msra.mxu0 0.0
    %415 = vmatprep.subr.mxu0 0.0
    %416 = vmatpush1.msra.mxu0 0.0
    %417 = vmatprep.subr.mxu0 0.0
    %418 = vmatpush1.msra.mxu0 0.0
    %419 = vmatprep.subr.mxu0 0.0
    %420 = vmatpush1.msra.mxu0 0.0
    %421 = vmatprep.subr.mxu0 0.0
    %422 = vmatpush1.msra.mxu0 0.0
    %423 = vmatprep.mubr.f32.mxu0 0.0
    %424 = vmatmul.mubr.f32.gmra.mrb[0].mxu0 %v357
    %v425 = vpop.f32.mrb[0].mxu0
    %v426 = vadd.f32 %v354, %v425
    %v427 = vpop.f32.mrb[0].mxu0
    %428 = vdwg.mxu0
    %s429 = scalar_lea.vmem %s4, 1
    %v430 = vld [vmem:[%s429] sm:$0x1]
    %v432 = vlaneseq
    %v433 = vshrl.u32 %v432, 7
    %v434 = vsub.s32 0, %v433
    %v435 = vrot.slane %v430, %v434
    %v437 = vadd.f32 %v426, %v435
    %v438 = vxor.u32 %v437, 2147483648
    %v439 = vmul.f32 %v438, 1.442695
    %v440 = vpow.pop %v439
    %v441 = vadd.f32 %v440, 1.0
    %v442 = vrcp.pop %v441
    %v443 = vmul.f32 1.0, %v442
    %445 = vrot.lane.b32.xlu0 %v437, 32
    %v446 = vpop.permute.xlu0 %445
    %v448 = vmul.f32 %v443, %v446
    %450 = vrot.lane.b32.xlu0 %v448, 64
    %v451 = vpop.permute.xlu0 %450
    %v453 = vadd.f32 %v437, %v451
    %v454 = vtanh.pop %v453
    %v455 = vsub.f32 1.0, %v443
    %457 = vrot.lane.b32.xlu0 %v454, 96
    %v458 = vpop.permute.xlu0 %457
    %v460 = vmul.f32 %v455, %v458
    %461 = vrot.lane.b32.xlu0 %v273, 32
    %v462 = vpop.permute.xlu0 %461
    %v464 = vmul.f32 %v443, %v462
    %v465 = vadd.f32 %v460, %v464
    %467 = vrot.lane.b32.xlu0 %v465, 96
    %v468 = vpop.permute.xlu0 %467
    %s470 = scalar_lea.vmem [#allocation10], 8
    %471 = vst.msk [vmem:[%s470] sm:$0xff] %vm84, %v468
    %s472 = scalar_lea.vmem [#allocation5], 16
    %v473 = vld [vmem:[%s472] sm:$0xff]
    %s474 = scalar_lea.vmem [#allocation7], 64
    %v475 = vld [vmem:[%s474] sm:$0xff]
    %v476 = vld [vmem:[%s474 + $0x8] sm:$0xff]
    %v477 = vld [vmem:[%s474 + $0x10] sm:$0xff]
    %v478 = vld [vmem:[%s474 + $0x18] sm:$0xff]
    %s479 = scalar_lea.vmem [#allocation8], 64
    %v480 = vld [vmem:[%s479] sm:$0xff]
    %v481 = vld [vmem:[%s479 + $0x8] sm:$0xff]
    %v482 = vld [vmem:[%s479 + $0x10] sm:$0xff]
    %v483 = vld [vmem:[%s479 + $0x18] sm:$0xff]
    %v485 = vsel %vm84, %v473, 0
    %487 = vmatprep.subr.mxu0 0.0
    %488 = vmatpush1.msra.mxu0 %v480
    %489 = vmatprep.subr.mxu0 0.0
    %490 = vmatpush1.msra.mxu0 %v481
    %491 = vmatprep.subr.mxu0 0.0
    %492 = vmatpush1.msra.mxu0 %v482
    %493 = vmatprep.subr.mxu0 0.0
    %494 = vmatpush1.msra.mxu0 %v483
    %495 = vmatprep.subr.mxu0 0.0
    %496 = vmatpush1.msra.mxu0 0.0
    %497 = vmatprep.subr.mxu0 0.0
    %498 = vmatpush1.msra.mxu0 0.0
    %499 = vmatprep.subr.mxu0 0.0
    %500 = vmatpush1.msra.mxu0 0.0
    %501 = vmatprep.subr.mxu0 0.0
    %502 = vmatpush1.msra.mxu0 0.0
    %503 = vmatprep.subr.mxu0 0.0
    %504 = vmatpush1.msra.mxu0 0.0
    %505 = vmatprep.subr.mxu0 0.0
    %506 = vmatpush1.msra.mxu0 0.0
    %507 = vmatprep.subr.mxu0 0.0
    %508 = vmatpush1.msra.mxu0 0.0
    %509 = vmatprep.subr.mxu0 0.0
    %510 = vmatpush1.msra.mxu0 0.0
    %511 = vmatprep.subr.mxu0 0.0
    %512 = vmatpush1.msra.mxu0 0.0
    %513 = vmatprep.subr.mxu0 0.0
    %514 = vmatpush1.msra.mxu0 0.0
    %515 = vmatprep.subr.mxu0 0.0
    %516 = vmatpush1.msra.mxu0 0.0
    %517 = vmatprep.subr.mxu0 0.0
    %518 = vmatpush1.msra.mxu0 0.0
    %519 = vmatprep.subr.mxu0 0.0
    %520 = vmatpush1.msra.mxu0 0.0
    %521 = vmatprep.subr.mxu0 0.0
    %522 = vmatpush1.msra.mxu0 0.0
    %523 = vmatprep.subr.mxu0 0.0
    %524 = vmatpush1.msra.mxu0 0.0
    %525 = vmatprep.subr.mxu0 0.0
    %526 = vmatpush1.msra.mxu0 0.0
    %527 = vmatprep.subr.mxu0 0.0
    %528 = vmatpush1.msra.mxu0 0.0
    %529 = vmatprep.subr.mxu0 0.0
    %530 = vmatpush1.msra.mxu0 0.0
    %531 = vmatprep.subr.mxu0 0.0
    %532 = vmatpush1.msra.mxu0 0.0
    %533 = vmatprep.subr.mxu0 0.0
    %534 = vmatpush1.msra.mxu0 0.0
    %535 = vmatprep.subr.mxu0 0.0
    %536 = vmatpush1.msra.mxu0 0.0
    %537 = vmatprep.subr.mxu0 0.0
    %538 = vmatpush1.msra.mxu0 0.0
    %539 = vmatprep.subr.mxu0 0.0
    %540 = vmatpush1.msra.mxu0 0.0
    %541 = vmatprep.subr.mxu0 0.0
    %542 = vmatpush1.msra.mxu0 0.0
    %543 = vmatprep.subr.mxu0 0.0
    %544 = vmatpush1.msra.mxu0 0.0
    %545 = vmatprep.subr.mxu0 0.0
    %546 = vmatpush1.msra.mxu0 0.0
    %547 = vmatprep.subr.mxu0 0.0
    %548 = vmatpush1.msra.mxu0 0.0
    %549 = vmatprep.subr.mxu0 0.0
    %550 = vmatpush1.msra.mxu0 0.0
    %551 = vmatprep.mubr.f32.mxu0 0.0
    %552 = vmatmul.mubr.f32.gmra.mrb[0].mxu0 %v485
    %v553 = vpop.f32.mrb[0].mxu0
    %v554 = vadd.f32 0.0, %v553
    %v555 = vpop.f32.mrb[0].mxu0
    %556 = vdwg.mxu0
    %v557 = vsel %vm84, %v468, 0
    %559 = vmatprep.subr.mxu0 0.0
    %560 = vmatpush1.msra.mxu0 %v475
    %561 = vmatprep.subr.mxu0 0.0
    %562 = vmatpush1.msra.mxu0 %v476
    %563 = vmatprep.subr.mxu0 0.0
    %564 = vmatpush1.msra.mxu0 %v477
    %565 = vmatprep.subr.mxu0 0.0
    %566 = vmatpush1.msra.mxu0 %v478
    %567 = vmatprep.subr.mxu0 0.0
    %568 = vmatpush1.msra.mxu0 0.0
    %569 = vmatprep.subr.mxu0 0.0
    %570 = vmatpush1.msra.mxu0 0.0
    %571 = vmatprep.subr.mxu0 0.0
    %572 = vmatpush1.msra.mxu0 0.0
    %573 = vmatprep.subr.mxu0 0.0
    %574 = vmatpush1.msra.mxu0 0.0
    %575 = vmatprep.subr.mxu0 0.0
    %576 = vmatpush1.msra.mxu0 0.0
    %577 = vmatprep.subr.mxu0 0.0
    %578 = vmatpush1.msra.mxu0 0.0
    %579 = vmatprep.subr.mxu0 0.0
    %580 = vmatpush1.msra.mxu0 0.0
    %581 = vmatprep.subr.mxu0 0.0
    %582 = vmatpush1.msra.mxu0 0.0
    %583 = vmatprep.subr.mxu0 0.0
    %584 = vmatpush1.msra.mxu0 0.0
    %585 = vmatprep.subr.mxu0 0.0
    %586 = vmatpush1.msra.mxu0 0.0
    %587 = vmatprep.subr.mxu0 0.0
    %588 = vmatpush1.msra.mxu0 0.0
    %589 = vmatprep.subr.mxu0 0.0
    %590 = vmatpush1.msra.mxu0 0.0
    %591 = vmatprep.subr.mxu0 0.0
    %592 = vmatpush1.msra.mxu0 0.0
    %593 = vmatprep.subr.mxu0 0.0
    %594 = vmatpush1.msra.mxu0 0.0
    %595 = vmatprep.subr.mxu0 0.0
    %596 = vmatpush1.msra.mxu0 0.0
    %597 = vmatprep.subr.mxu0 0.0
    %598 = vmatpush1.msra.mxu0 0.0
    %599 = vmatprep.subr.mxu0 0.0
    %600 = vmatpush1.msra.mxu0 0.0
    %601 = vmatprep.subr.mxu0 0.0
    %602 = vmatpush1.msra.mxu0 0.0
    %603 = vmatprep.subr.mxu0 0.0
    %604 = vmatpush1.msra.mxu0 0.0
    %605 = vmatprep.subr.mxu0 0.0
    %606 = vmatpush1.msra.mxu0 0.0
    %607 = vmatprep.subr.mxu0 0.0
    %608 = vmatpush1.msra.mxu0 0.0
    %609 = vmatprep.subr.mxu0 0.0
    %610 = vmatpush1.msra.mxu0 0.0
    %611 = vmatprep.subr.mxu0 0.0
    %612 = vmatpush1.msra.mxu0 0.0
    %613 = vmatprep.subr.mxu0 0.0
    %614 = vmatpush1.msra.mxu0 0.0
    %615 = vmatprep.subr.mxu0 0.0
    %616 = vmatpush1.msra.mxu0 0.0
    %617 = vmatprep.subr.mxu0 0.0
    %618 = vmatpush1.msra.mxu0 0.0
    %619 = vmatprep.subr.mxu0 0.0
    %620 = vmatpush1.msra.mxu0 0.0
    %621 = vmatprep.subr.mxu0 0.0
    %622 = vmatpush1.msra.mxu0 0.0
    %623 = vmatprep.mubr.f32.mxu0 0.0
    %624 = vmatmul.mubr.f32.gmra.mrb[0].mxu0 %v557
    %v625 = vpop.f32.mrb[0].mxu0
    %v626 = vadd.f32 %v554, %v625
    %v627 = vpop.f32.mrb[0].mxu0
    %628 = vdwg.mxu0
    %s629 = scalar_lea.vmem %s4, 2
    %v630 = vld [vmem:[%s629] sm:$0x1]
    %v632 = vlaneseq
    %v633 = vshrl.u32 %v632, 7
    %v634 = vsub.s32 0, %v633
    %v635 = vrot.slane %v630, %v634
    %v637 = vadd.f32 %v626, %v635
    %v638 = vxor.u32 %v637, 2147483648
    %v639 = vmul.f32 %v638, 1.442695
    %v640 = vpow.pop %v639
    %v641 = vadd.f32 %v640, 1.0
    %v642 = vrcp.pop %v641
    %v643 = vmul.f32 1.0, %v642
    %645 = vrot.lane.b32.xlu0 %v637, 32
    %v646 = vpop.permute.xlu0 %645
    %v648 = vmul.f32 %v643, %v646
    %650 = vrot.lane.b32.xlu0 %v648, 64
    %v651 = vpop.permute.xlu0 %650
    %v653 = vadd.f32 %v637, %v651
    %v654 = vtanh.pop %v653
    %v655 = vsub.f32 1.0, %v643
    %657 = vrot.lane.b32.xlu0 %v654, 96
    %v658 = vpop.permute.xlu0 %657
    %v660 = vmul.f32 %v655, %v658
    %661 = vrot.lane.b32.xlu0 %v473, 32
    %v662 = vpop.permute.xlu0 %661
    %v664 = vmul.f32 %v643, %v662
    %v665 = vadd.f32 %v660, %v664
    %667 = vrot.lane.b32.xlu0 %v665, 96
    %v668 = vpop.permute.xlu0 %667
    %s670 = scalar_lea.vmem [#allocation10], 16
    %671 = vst.msk [vmem:[%s670] sm:$0xff] %vm84, %v668
    // Predicated region
    $region38: #{tpu_custom_call.1} parent=1 // pred_check
      _
    $region39: #{tpu_custom_call.1} parent=1 // pred_check_branch
      %673 = sbr.rel (0) target = $region41
    $region40: #{tpu_custom_call.1} parent=1 // pred_region
      %s675 = ssub.s32 384, 384
      %676 = vsyncadd [#allocation4], %s675
      %s677 = sshll.u32 [#allocation10], 4
      %s678 = int_to_ptr.vmem [resolvable:$true] %s677
      %683 = dma.vmem_to_hbm [thread:$0]  %s678, 384, %s5, [#allocation4], 128, 128, 8
    $region41: #{tpu_custom_call.1} parent=1 // pred_fallthru
      _
    // Predicated region
    $region42: #{tpu_custom_call.1} parent=1 // pred_check
      _
    $region43: #{tpu_custom_call.1} parent=1 // pred_check_branch
      %685 = sbr.rel (0) target = $region45
    $region44: #{tpu_custom_call.1} parent=1 // pred_region
      %686 = dma.done [#allocation4], 384
    $region45: #{tpu_custom_call.1} parent=1 // pred_fallthru
      _
    %687 = vsyncpa [#allocation3], 1
    %688 = vsyncpa [#allocation6], 1
    %689 = vsyncpa [#allocation9], 1
    %690 = vsyncpa [#allocation4], 1

</llo_original>
